<compile_context>
chip_gen: v7x
topology: tpu7x:2x2x1
jax: 0.10.0
libtpu: 0.0.40
codegen_flags: <defaults>
</compile_context>

<pallas_src>
import functools
import math

import jax
import jax.numpy as jnp
from jax.experimental import pallas as pl
from jax.experimental.pallas import tpu as pltpu


# ------------------------------ fused kernel ------------------------------- #

def fused_mlm_kernel(xm_ref, og_ref, mk_ref, pool_ref,
                     w1t_ref, b1t_ref, w2t_ref, b2t_ref, clst_ref, wrt_ref, brt_ref,
                     cls_out_ref, sse_ref, cnt_ref):
    """Encoder MLP -> CLS pooling -> reconstruction -> masked SSE for one row tile.

    Everything is transposed: the (large) B*N row axis sits on the 128-lane
    axis, features (d_in / H / D) sit on sublanes.  Token features `t` and the
    reconstruction `x_pred` never leave VMEM/vregs.  There is NO cross-step
    state: each grid step writes its own CLS block and its own sse/cnt partial,
    so the grid axis is safe to mark "parallel" (v7x megacore).
    """
    # encoder MLP: (H,d_in)@(d_in,T) -> tanh -> (D,H)@(H,T)
    x = xm_ref[...]                                                          # (d_in, T)
    h = jnp.tanh(jnp.dot(w1t_ref[...], x,
                         preferred_element_type=jnp.float32) + b1t_ref[...])  # (H, T)
    t = jnp.dot(w2t_ref[...], h,
                preferred_element_type=jnp.float32) + b2t_ref[...]            # (D, T)

    # contextual CLS for the sequences fully contained in this tile:
    # block-diagonal mean-pooling matmul (pool is grid-invariant, size-capped).
    pooled = jnp.dot(t, pool_ref[...], preferred_element_type=jnp.float32)    # (D, bpt)
    cls_out_ref[...] = (clst_ref[...] + pooled).astype(cls_out_ref.dtype)

    # reconstruction linear (d_in,D)@(D,T), fused with the masked-SSE reduction
    x_pred = jnp.dot(wrt_ref[...], t,
                     preferred_element_type=jnp.float32) + brt_ref[...]       # (d_in, T)
    m = mk_ref[...].astype(jnp.float32)                                       # int8 -> f32
    d = (x_pred - og_ref[...]) * m

    # per-tile partials (summed outside): one scalar reduce per LARGE tile,
    # written into a safe (8,128)-shaped block.
    sse_ref[...] = jnp.broadcast_to(jnp.sum(d * d), sse_ref.shape).astype(jnp.float32)
    cnt_ref[...] = jnp.broadcast_to(jnp.sum(m), cnt_ref.shape).astype(jnp.float32)


# ------------------------------ tiling helper ------------------------------ #

def _pick_tile_cols(M, N, target_cols=4096, max_pool_bytes=4 * 1024 * 1024):
    """Pick the per-step column tile (== rows of the original [B,N,d_in] layout).

    Constraints: whole sequences per tile (multiple of N), tile divides M,
    lane-aligned (tile % 128 == 0) unless a single tile covers all of M, and the
    (tile, tile//N) f32 pooling matrix stays under `max_pool_bytes` so its VMEM
    footprint cannot scale quadratically past the budget (relevant for v7x's
    64 MiB).  Returns None when no admissible tile exists (caller falls back
    to the plain-jnp path).
    """
    nseq = M // N
    valid = []
    for bpt in range(1, nseq + 1):
        if nseq % bpt:
            continue
        t = bpt * N
        if (t % 128 == 0 or t == M) and 4 * t * bpt <= max_pool_bytes:
            valid.append(t)
    if not valid:
        return None
    under = [t for t in valid if t <= target_cols]
    return max(under) if under else min(valid)


# ------------------------------ kernel wrapper ------------------------------ #

def fused_encode_recon_loss(x_masked_t, orig_t, mask_t,
                            w1, b1, w2, b2, cls_emb, wr, br,
                            num_tokens, target_cols=4096):
    """Fused encoder + CLS pooling + reconstruction + masked SSE.

    Inputs are already transposed: x_masked_t / orig_t are (d_in, B*N) f32 and
    mask_t is (d_in, B*N) bool.  Returns (cls_token [B,D], sse, cnt), or None
    if no admissible tiling exists (caller should use the jnp fallback).
    """
    d_in, M = x_masked_t.shape
    N = num_tokens
    H = w1.shape[1]
    D = w2.shape[1]

    tile = _pick_tile_cols(M, N, target_cols=target_cols)
    if tile is None:
        return None
    bpt = tile // N               # whole sequences per tile
    grid = M // tile

    # block-diagonal mean-pooling matrix: column s has 1/N over its own N rows.
    pool = jnp.repeat(jnp.eye(bpt, dtype=jnp.float32), N, axis=0) / jnp.float32(N)

    mk_i8 = mask_t.astype(jnp.int8)   # narrow HBM stream; upcast inside the kernel

    # transposed parameters (tiny, folded by XLA)
    w1t, b1t = w1.T, b1.T             # (H, d_in), (H, 1)
    w2t, b2t = w2.T, b2.T             # (D, H),   (D, 1)
    clst = cls_emb.T                  # (D, 1)
    wrt, brt = wr.T, br.T             # (d_in, D), (d_in, 1)

    cls3, sse_p, cnt_p = pl.pallas_call(
        fused_mlm_kernel,
        grid=(grid,),
        in_specs=[
            pl.BlockSpec((d_in, tile), lambda i: (0, i)),   # masked input rows (f32)
            pl.BlockSpec((d_in, tile), lambda i: (0, i)),   # original rows     (f32)
            pl.BlockSpec((d_in, tile), lambda i: (0, i)),   # mask rows         (int8)
            pl.BlockSpec((tile, bpt), lambda i: (0, 0)),    # pooling matrix (grid-invariant)
            pl.BlockSpec((H, d_in), lambda i: (0, 0)),      # w1^T
            pl.BlockSpec((H, 1), lambda i: (0, 0)),         # b1^T
            pl.BlockSpec((D, H), lambda i: (0, 0)),         # w2^T
            pl.BlockSpec((D, 1), lambda i: (0, 0)),         # b2^T
            pl.BlockSpec((D, 1), lambda i: (0, 0)),         # cls embedding^T
            pl.BlockSpec((d_in, D), lambda i: (0, 0)),      # wr^T
            pl.BlockSpec((d_in, 1), lambda i: (0, 0)),      # br^T
        ],
        out_specs=(
            pl.BlockSpec((None, D, bpt), lambda i: (i, 0, 0)),   # CLS block per tile
            pl.BlockSpec((None, 8, 128), lambda i: (i, 0, 0)),   # SSE partial per tile
            pl.BlockSpec((None, 8, 128), lambda i: (i, 0, 0)),   # count partial per tile
        ),
        out_shape=(
            jax.ShapeDtypeStruct((grid, D, bpt), jnp.float32),
            jax.ShapeDtypeStruct((grid, 8, 128), jnp.float32),
            jax.ShapeDtypeStruct((grid, 8, 128), jnp.float32),
        ),
        compiler_params=pltpu.CompilerParams(
            dimension_semantics=("parallel",),      # no cross-step state -> megacore OK
            vmem_limit_bytes=32 * 1024 * 1024,      # fits v5e/v6e/v7x scoped budgets
        ),
    )(x_masked_t, orig_t, mk_i8, pool, w1t, b1t, w2t, b2t, clst, wrt, brt)

    B = M // N
    # tile i holds sequences [i*bpt, (i+1)*bpt) in its lane (last) axis
    cls_token = jnp.moveaxis(cls3, 1, 2).reshape(B, D)
    sse = jnp.sum(sse_p[:, 0, 0])
    cnt = jnp.sum(cnt_p[:, 0, 0])
    return cls_token, sse, cnt


# --------------------------- jnp reference / fallback ----------------------- #

def encode_recon_loss_ref(x_masked_t, orig_t, mask_t,
                          w1, b1, w2, b2, cls_emb, wr, br, num_tokens):
    """Plain-jnp path (small-problem fallback + correctness reference)."""
    hp = jax.lax.Precision.HIGHEST
    xm = x_masked_t.T                                               # (M, d_in)
    h = jnp.tanh(jnp.dot(xm, w1, precision=hp) + b1)
    t = jnp.dot(h, w2, precision=hp) + b2                           # (M, D)
    B = t.shape[0] // num_tokens
    cls_token = cls_emb + t.reshape(B, num_tokens, -1).mean(axis=1)
    x_pred = jnp.dot(t, wr, precision=hp) + br
    m = mask_t.T.astype(jnp.float32)
    d = (x_pred - orig_t.T) * m
    return cls_token, jnp.sum(d * d), jnp.sum(m)


# --------------------------------- glue ------------------------------------ #

def mask_seq(key, seq, mask_prob=0.15, replace_prob=0.9, random_token_prob=0.1):
    """JAX version of the torch mask_seq (elementwise masks + random-token swap)."""
    k1, k2, k3, k4 = jax.random.split(key, 4)
    mask = jax.random.uniform(k1, seq.shape) < mask_prob
    mask_out = mask
    idx = jax.random.permutation(k2, seq.size)
    random_tokens = seq.reshape(-1)[idx].reshape(seq.shape)
    rtp = (jax.random.uniform(k3, seq.shape) < random_token_prob) & mask
    masked_seq = jnp.where(rtp, random_tokens, seq)
    mask2 = mask & ~rtp
    rep = jax.random.uniform(k4, seq.shape) < replace_prob
    masked_seq = jnp.where(mask2 & rep, jnp.float32(0.0), masked_seq)  # mask_token_id = 0
    return masked_seq, mask_out


def masked_wrapper_forward(key, x, variables, params,
                           num_segments, segment_len,
                           gamma=0.1, mask_prob=0.15,
                           replace_prob=0.9, random_token_prob=0.1,
                           use_pallas=None):
    (w1, b1, w2, b2, cls_emb, sep_emb, wr, br, wv, bv) = params
    # The synthetic net inserts CLS/[SEP] tokens and the wrapper immediately
    # strips them (remove_sep): the round trip is an identity, so it is elided
    # (x_pred entering reconstruction == encoder tokens, cls_token == contextual CLS).
    del sep_emb, num_segments, segment_len

    B, N, d_in = x.shape
    M = B * N

    # Single HBM transpose of x into the lane-dense [d_in, B*N] layout; mask_seq
    # is elementwise so it runs in (and emits) the transposed layout directly.
    x_t = x.reshape(M, d_in).T
    x_masked_t, mask_t = mask_seq(key, x_t, mask_prob, replace_prob, random_token_prob)

    if use_pallas is None:
        # tiny problems: launch/pipeline overhead dominates, let XLA fuse instead.
        use_pallas = (M * d_in) >= (1 << 20)

    out = None
    if use_pallas:
        out = fused_encode_recon_loss(x_masked_t, x_t, mask_t,
                                      w1, b1, w2, b2, cls_emb, wr, br, num_tokens=N)
    if out is None:
        out = encode_recon_loss_ref(x_masked_t, x_t, mask_t,
                                    w1, b1, w2, b2, cls_emb, wr, br, num_tokens=N)
    cls_token, sse, cnt = out

    # Intentional divergence: cnt == 0 (nothing masked) -> loss 0 instead of NaN.
    reconstruction_loss = sse / jnp.maximum(cnt, jnp.float32(1.0))

    # variable_net + sysID loss: tiny (B,D)x(D,num_vars) matmul + MSE, plain jnp.
    variables_pred = cls_token @ wv + bv
    sysID_loss = gamma * jnp.mean((variables - variables_pred) ** 2)

    loss = reconstruction_loss + sysID_loss
    return loss, reconstruction_loss, sysID_loss


# --------------------------------- main ------------------------------------ #

if __name__ == "__main__":
    B = 2
    NUM_SEGMENTS = 2
    SEGMENT_LEN = 8
    N = NUM_SEGMENTS * SEGMENT_LEN          # num_tokens = 16
    D_IN = 8                                # d_in
    H = 32                                  # encoder hidden
    D_MODEL = 32                            # d_model
    NUM_VARS = 4

    root = jax.random.PRNGKey(0)
    k_x, k_v, k_mask, kp = jax.random.split(root, 4)
    pks = jax.random.split(kp, 10)

    params = (
        jax.random.normal(pks[0], (D_IN, H), jnp.float32) / math.sqrt(D_IN),           # w1
        jnp.zeros((1, H), jnp.float32),                                                # b1
        jax.random.normal(pks[1], (H, D_MODEL), jnp.float32) / math.sqrt(H),           # w2
        jnp.zeros((1, D_MODEL), jnp.float32),                                          # b2
        jax.random.normal(pks[2], (1, D_MODEL), jnp.float32) * 0.02,                   # cls_emb
        jax.random.normal(pks[3], (1, D_MODEL), jnp.float32) * 0.02,                   # sep_emb (elided)
        jax.random.normal(pks[4], (D_MODEL, D_IN), jnp.float32) / math.sqrt(D_MODEL),  # wr
        jnp.zeros((1, D_IN), jnp.float32),                                             # br
        jax.random.normal(pks[5], (D_MODEL, NUM_VARS), jnp.float32) / math.sqrt(D_MODEL),  # wv
        jnp.zeros((1, NUM_VARS), jnp.float32),                                         # bv
    )

    x = jax.random.normal(k_x, (B, N, D_IN), jnp.float32)
    variables = jax.random.normal(k_v, (B, NUM_VARS), jnp.float32)

    fwd = jax.jit(functools.partial(masked_wrapper_forward,
                                    num_segments=NUM_SEGMENTS,
                                    segment_len=SEGMENT_LEN,
                                    gamma=0.1, use_pallas=True))
    fwd_ref = jax.jit(functools.partial(masked_wrapper_forward,
                                        num_segments=NUM_SEGMENTS,
                                        segment_len=SEGMENT_LEN,
                                        gamma=0.1, use_pallas=False))

    loss, rec_loss, sys_loss = fwd(k_mask, x, variables, params)
    jax.block_until_ready((loss, rec_loss, sys_loss))

    # cross-check the fused Pallas path against the plain-jnp reference
    loss_r, rec_r, sys_r = fwd_ref(k_mask, x, variables, params)
    jax.block_until_ready((loss_r, rec_r, sys_r))

    assert jnp.isfinite(loss) and jnp.isfinite(rec_loss) and jnp.isfinite(sys_loss)
    assert jnp.allclose(loss, loss_r, rtol=1e-3, atol=1e-3), (loss, loss_r)
    assert jnp.allclose(rec_loss, rec_r, rtol=1e-3, atol=1e-3), (rec_loss, rec_r)
    print("KERNEL_OK")
</pallas_src>

<mosaic_0001>
module attributes {stable_mosaic.version = 11 : i64} {
  func.func @fused_mlm_kernel(%arg0: i32, %arg1: memref<8x32xf32, #tpu.memory_space<vmem>>, %arg2: memref<8x32xf32, #tpu.memory_space<vmem>>, %arg3: memref<8x32xi8, #tpu.memory_space<vmem>>, %arg4: memref<32x2xf32, #tpu.memory_space<vmem>>, %arg5: memref<32x8xf32, #tpu.memory_space<vmem>>, %arg6: memref<32x1xf32, #tpu.memory_space<vmem>>, %arg7: memref<32x32xf32, #tpu.memory_space<vmem>>, %arg8: memref<32x1xf32, #tpu.memory_space<vmem>>, %arg9: memref<32x1xf32, #tpu.memory_space<vmem>>, %arg10: memref<8x32xf32, #tpu.memory_space<vmem>>, %arg11: memref<8x1xf32, #tpu.memory_space<vmem>>, %arg12: memref<1x32x2xf32, #tpu.memory_space<vmem>>, %arg13: memref<1x8x128xf32, #tpu.memory_space<vmem>>, %arg14: memref<1x8x128xf32, #tpu.memory_space<vmem>>) attributes {dimension_semantics = [#tpu.dimension_semantics<parallel>], iteration_bounds = array<i64: 1>, scalar_prefetch = 0 : i64, scratch_operands = 0 : i64, tpu.core_type = #tpu.core_type<tc>, window_params = [{transform_indices = @transform_0, window_bounds = array<i64: 8, 32>}, {transform_indices = @transform_1, window_bounds = array<i64: 8, 32>}, {transform_indices = @transform_2, window_bounds = array<i64: 8, 32>}, {pipeline_mode = #tpu.pipeline_mode<synchronous>, transform_indices = @transform_3, window_bounds = array<i64: 32, 2>}, {pipeline_mode = #tpu.pipeline_mode<synchronous>, transform_indices = @transform_4, window_bounds = array<i64: 32, 8>}, {pipeline_mode = #tpu.pipeline_mode<synchronous>, transform_indices = @transform_5, window_bounds = array<i64: 32, 1>}, {pipeline_mode = #tpu.pipeline_mode<synchronous>, transform_indices = @transform_6, window_bounds = array<i64: 32, 32>}, {pipeline_mode = #tpu.pipeline_mode<synchronous>, transform_indices = @transform_7, window_bounds = array<i64: 32, 1>}, {pipeline_mode = #tpu.pipeline_mode<synchronous>, transform_indices = @transform_8, window_bounds = array<i64: 32, 1>}, {pipeline_mode = #tpu.pipeline_mode<synchronous>, transform_indices = @transform_9, window_bounds = array<i64: 8, 32>}, {pipeline_mode = #tpu.pipeline_mode<synchronous>, transform_indices = @transform_10, window_bounds = array<i64: 8, 1>}, {transform_indices = @transform_11, window_bounds = array<i64: 1, 32, 2>}, {transform_indices = @transform_12, window_bounds = array<i64: 1, 8, 128>}, {transform_indices = @transform_13, window_bounds = array<i64: 1, 8, 128>}]} {
    %c0 = arith.constant 0 : index
    %c0_0 = arith.constant 0 : index
    %0 = vector.load %arg1[%c0, %c0_0] : memref<8x32xf32, #tpu.memory_space<vmem>>, vector<8x32xf32>
    %c0_1 = arith.constant 0 : index
    %c0_2 = arith.constant 0 : index
    %1 = vector.load %arg5[%c0_1, %c0_2] : memref<32x8xf32, #tpu.memory_space<vmem>>, vector<32x8xf32>
    %cst = arith.constant dense<0.000000e+00> : vector<32x32xf32>
    %2 = tpu.matmul %1, %0, %cst {dimension_numbers = #tpu.dot_dimension_numbers<[1], [0], [0], [1], [0, 0, 1, 1], [], []>} : vector<32x8xf32>, vector<8x32xf32>, vector<32x32xf32> -> vector<32x32xf32>
    %c0_3 = arith.constant 0 : index
    %c0_4 = arith.constant 0 : index
    %3 = vector.load %arg6[%c0_3, %c0_4] : memref<32x1xf32, #tpu.memory_space<vmem>>, vector<32x1xf32>
    %4 = vector.broadcast %3 : vector<32x1xf32> to vector<32x32xf32>
    %5 = arith.addf %2, %4 : vector<32x32xf32>
    %6 = math.tanh %5 : vector<32x32xf32>
    %c0_5 = arith.constant 0 : index
    %c0_6 = arith.constant 0 : index
    %7 = vector.load %arg7[%c0_5, %c0_6] : memref<32x32xf32, #tpu.memory_space<vmem>>, vector<32x32xf32>
    %cst_7 = arith.constant dense<0.000000e+00> : vector<32x32xf32>
    %8 = tpu.matmul %7, %6, %cst_7 {dimension_numbers = #tpu.dot_dimension_numbers<[1], [0], [0], [1], [0, 0, 1, 1], [], []>} : vector<32x32xf32>, vector<32x32xf32>, vector<32x32xf32> -> vector<32x32xf32>
    %c0_8 = arith.constant 0 : index
    %c0_9 = arith.constant 0 : index
    %9 = vector.load %arg8[%c0_8, %c0_9] : memref<32x1xf32, #tpu.memory_space<vmem>>, vector<32x1xf32>
    %10 = vector.broadcast %9 : vector<32x1xf32> to vector<32x32xf32>
    %11 = arith.addf %8, %10 : vector<32x32xf32>
    %c0_10 = arith.constant 0 : index
    %c0_11 = arith.constant 0 : index
    %12 = vector.load %arg4[%c0_10, %c0_11] : memref<32x2xf32, #tpu.memory_space<vmem>>, vector<32x2xf32>
    %cst_12 = arith.constant dense<0.000000e+00> : vector<32x2xf32>
    %13 = tpu.matmul %11, %12, %cst_12 {dimension_numbers = #tpu.dot_dimension_numbers<[1], [0], [0], [1], [0, 0, 1, 1], [], []>} : vector<32x32xf32>, vector<32x2xf32>, vector<32x2xf32> -> vector<32x2xf32>
    %c0_13 = arith.constant 0 : index
    %c0_14 = arith.constant 0 : index
    %14 = vector.load %arg9[%c0_13, %c0_14] : memref<32x1xf32, #tpu.memory_space<vmem>>, vector<32x1xf32>
    %15 = vector.broadcast %14 : vector<32x1xf32> to vector<32x2xf32>
    %16 = arith.addf %15, %13 : vector<32x2xf32>
    %c0_15 = arith.constant 0 : index
    %c0_16 = arith.constant 0 : index
    %c0_17 = arith.constant 0 : index
    %17 = vector.load %arg12[%c0_15, %c0_16, %c0_17] : memref<1x32x2xf32, #tpu.memory_space<vmem>>, vector<1x32x2xf32>
    %18 = vector.shape_cast %17 : vector<1x32x2xf32> to vector<32x2xf32>
    %19 = vector.shape_cast %16 : vector<32x2xf32> to vector<1x32x2xf32>
    tpu.vector_store %arg12[%c0_15, %c0_16, %c0_17], %19 {strides = array<i32>} : memref<1x32x2xf32, #tpu.memory_space<vmem>>, vector<1x32x2xf32>,
    %c0_18 = arith.constant 0 : index
    %c0_19 = arith.constant 0 : index
    %20 = vector.load %arg10[%c0_18, %c0_19] : memref<8x32xf32, #tpu.memory_space<vmem>>, vector<8x32xf32>
    %cst_20 = arith.constant dense<0.000000e+00> : vector<8x32xf32>
    %21 = tpu.matmul %20, %11, %cst_20 {dimension_numbers = #tpu.dot_dimension_numbers<[1], [0], [0], [1], [0, 0, 1, 1], [], []>} : vector<8x32xf32>, vector<32x32xf32>, vector<8x32xf32> -> vector<8x32xf32>
    %c0_21 = arith.constant 0 : index
    %c0_22 = arith.constant 0 : index
    %22 = vector.load %arg11[%c0_21, %c0_22] : memref<8x1xf32, #tpu.memory_space<vmem>>, vector<8x1xf32>
    %23 = vector.broadcast %22 : vector<8x1xf32> to vector<8x32xf32>
    %24 = arith.addf %21, %23 : vector<8x32xf32>
    %c0_23 = arith.constant 0 : index
    %c0_24 = arith.constant 0 : index
    %25 = vector.load %arg3[%c0_23, %c0_24] : memref<8x32xi8, #tpu.memory_space<vmem>>, vector<8x32xi8>
    %26 = arith.sitofp %25 : vector<8x32xi8> to vector<8x32xf32>
    %c0_25 = arith.constant 0 : index
    %c0_26 = arith.constant 0 : index
    %27 = vector.load %arg2[%c0_25, %c0_26] : memref<8x32xf32, #tpu.memory_space<vmem>>, vector<8x32xf32>
    %28 = arith.subf %24, %27 : vector<8x32xf32>
    %29 = arith.mulf %28, %26 : vector<8x32xf32>
    %30 = arith.mulf %29, %29 : vector<8x32xf32>
    %31 = vector.shape_cast %30 : vector<8x32xf32> to vector<1x8x32xf32>
    %cst_27 = arith.constant dense<0.000000e+00> : vector<1xf32>
    %32 = vector.multi_reduction <add>, %31, %cst_27 [1, 2] : vector<1x8x32xf32> to vector<1xf32>
    %33 = vector.shape_cast %32 : vector<1xf32> to vector<1x1x1xf32>
    %34 = vector.extract %33[0, 0, 0] : f32 from vector<1x1x1xf32>
    %35 = vector.broadcast %34 : f32 to vector<8x128xf32>
    %c0_28 = arith.constant 0 : index
    %c0_29 = arith.constant 0 : index
    %c0_30 = arith.constant 0 : index
    %36 = vector.load %arg13[%c0_28, %c0_29, %c0_30] : memref<1x8x128xf32, #tpu.memory_space<vmem>>, vector<1x8x128xf32>
    %37 = vector.shape_cast %36 : vector<1x8x128xf32> to vector<8x128xf32>
    %38 = vector.shape_cast %35 : vector<8x128xf32> to vector<1x8x128xf32>
    tpu.vector_store %arg13[%c0_28, %c0_29, %c0_30], %38 {strides = array<i32>} : memref<1x8x128xf32, #tpu.memory_space<vmem>>, vector<1x8x128xf32>,
    %39 = vector.shape_cast %26 : vector<8x32xf32> to vector<1x8x32xf32>
    %cst_31 = arith.constant dense<0.000000e+00> : vector<1xf32>
    %40 = vector.multi_reduction <add>, %39, %cst_31 [1, 2] : vector<1x8x32xf32> to vector<1xf32>
    %41 = vector.shape_cast %40 : vector<1xf32> to vector<1x1x1xf32>
    %42 = vector.extract %41[0, 0, 0] : f32 from vector<1x1x1xf32>
    %43 = vector.broadcast %42 : f32 to vector<8x128xf32>
    %c0_32 = arith.constant 0 : index
    %c0_33 = arith.constant 0 : index
    %c0_34 = arith.constant 0 : index
    %44 = vector.load %arg14[%c0_32, %c0_33, %c0_34] : memref<1x8x128xf32, #tpu.memory_space<vmem>>, vector<1x8x128xf32>
    %45 = vector.shape_cast %44 : vector<1x8x128xf32> to vector<8x128xf32>
    %46 = vector.shape_cast %43 : vector<8x128xf32> to vector<1x8x128xf32>
    tpu.vector_store %arg14[%c0_32, %c0_33, %c0_34], %46 {strides = array<i32>} : memref<1x8x128xf32, #tpu.memory_space<vmem>>, vector<1x8x128xf32>,
    return
  }
  func.func @transform_0(%arg0: i32) -> (i32, i32) {
    %c0_i32 = arith.constant 0 : i32
    %c0_i32_0 = arith.constant 0 : i32
    return %c0_i32, %arg0 : i32, i32
  }
  func.func @transform_1(%arg0: i32) -> (i32, i32) {
    %c0_i32 = arith.constant 0 : i32
    %c0_i32_0 = arith.constant 0 : i32
    return %c0_i32, %arg0 : i32, i32
  }
  func.func @transform_2(%arg0: i32) -> (i32, i32) {
    %c0_i32 = arith.constant 0 : i32
    %c0_i32_0 = arith.constant 0 : i32
    return %c0_i32, %arg0 : i32, i32
  }
  func.func @transform_3(%arg0: i32) -> (i32, i32) {
    %c0_i32 = arith.constant 0 : i32
    %c0_i32_0 = arith.constant 0 : i32
    %c0_i32_1 = arith.constant 0 : i32
    return %c0_i32, %c0_i32_0 : i32, i32
  }
  func.func @transform_4(%arg0: i32) -> (i32, i32) {
    %c0_i32 = arith.constant 0 : i32
    %c0_i32_0 = arith.constant 0 : i32
    %c0_i32_1 = arith.constant 0 : i32
    return %c0_i32, %c0_i32_0 : i32, i32
  }
  func.func @transform_5(%arg0: i32) -> (i32, i32) {
    %c0_i32 = arith.constant 0 : i32
    %c0_i32_0 = arith.constant 0 : i32
    %c0_i32_1 = arith.constant 0 : i32
    return %c0_i32, %c0_i32_0 : i32, i32
  }
  func.func @transform_6(%arg0: i32) -> (i32, i32) {
    %c0_i32 = arith.constant 0 : i32
    %c0_i32_0 = arith.constant 0 : i32
    %c0_i32_1 = arith.constant 0 : i32
    return %c0_i32, %c0_i32_0 : i32, i32
  }
  func.func @transform_7(%arg0: i32) -> (i32, i32) {
    %c0_i32 = arith.constant 0 : i32
    %c0_i32_0 = arith.constant 0 : i32
    %c0_i32_1 = arith.constant 0 : i32
    return %c0_i32, %c0_i32_0 : i32, i32
  }
  func.func @transform_8(%arg0: i32) -> (i32, i32) {
    %c0_i32 = arith.constant 0 : i32
    %c0_i32_0 = arith.constant 0 : i32
    %c0_i32_1 = arith.constant 0 : i32
    return %c0_i32, %c0_i32_0 : i32, i32
  }
  func.func @transform_9(%arg0: i32) -> (i32, i32) {
    %c0_i32 = arith.constant 0 : i32
    %c0_i32_0 = arith.constant 0 : i32
    %c0_i32_1 = arith.constant 0 : i32
    return %c0_i32, %c0_i32_0 : i32, i32
  }
  func.func @transform_10(%arg0: i32) -> (i32, i32) {
    %c0_i32 = arith.constant 0 : i32
    %c0_i32_0 = arith.constant 0 : i32
    %c0_i32_1 = arith.constant 0 : i32
    return %c0_i32, %c0_i32_0 : i32, i32
  }
  func.func @transform_11(%arg0: i32) -> (i32, i32, i32) {
    %c0_i32 = arith.constant 0 : i32
    %c0_i32_0 = arith.constant 0 : i32
    %c0_i32_1 = arith.constant 0 : i32
    return %arg0, %c0_i32, %c0_i32_0 : i32, i32, i32
  }
  func.func @transform_12(%arg0: i32) -> (i32, i32, i32) {
    %c0_i32 = arith.constant 0 : i32
    %c0_i32_0 = arith.constant 0 : i32
    %c0_i32_1 = arith.constant 0 : i32
    return %arg0, %c0_i32, %c0_i32_0 : i32, i32, i32
  }
  func.func @transform_13(%arg0: i32) -> (i32, i32, i32) {
    %c0_i32 = arith.constant 0 : i32
    %c0_i32_0 = arith.constant 0 : i32
    %c0_i32_1 = arith.constant 0 : i32
    return %arg0, %c0_i32, %c0_i32_0 : i32, i32, i32
  }
}

</mosaic_0001>

<llo_original>
// kernel: masked_wrapper_forward.1
$region0: #{masked_wrapper_forward.1}
  #allocation0 [shape = 'u32[]', space=smem, size = 0x4, offset = 0x4, fixed_abs, tag = 'smem constant byte address 0x4 - core index']
  #allocation1 [shape = 'u32[144,128]{1,0:T(1,128)}', space=vmem, size = 0x12000, scoped, tag = 'internal scratch']
  %s0 = inlined_call_operand.vmem [shape: f32[8,32], index: 0, kind: input, shape index: {}]
  %s1 = inlined_call_operand.vmem [shape: f32[8,32], index: 1, kind: input, shape index: {}]
  %s2 = inlined_call_operand.vmem [shape: s8[8,32], index: 2, kind: input, shape index: {}]
  %s3 = inlined_call_operand.vmem [shape: f32[32,2], index: 3, kind: input, shape index: {}]
  %s4 = inlined_call_operand.vmem [shape: f32[32,8], index: 4, kind: input, shape index: {}]
  %s5 = inlined_call_operand.vmem [shape: f32[32,1], index: 5, kind: input, shape index: {}]
  %s6 = inlined_call_operand.vmem [shape: f32[32,32], index: 6, kind: input, shape index: {}]
  %s7 = inlined_call_operand.vmem [shape: f32[32,1], index: 7, kind: input, shape index: {}]
  %s8 = inlined_call_operand.vmem [shape: f32[32,1], index: 8, kind: input, shape index: {}]
  %s9 = inlined_call_operand.vmem [shape: f32[8,32], index: 9, kind: input, shape index: {}]
  %s10 = inlined_call_operand.vmem [shape: f32[8,1], index: 10, kind: input, shape index: {}]
  %s11 = inlined_call_operand.vmem [shape: f32[1,32,2], index: 11, kind: output, shape index: {0}]
  %s12 = inlined_call_operand.vmem [shape: f32[1,8,128], index: 12, kind: output, shape index: {1}]
  %s13 = inlined_call_operand.vmem [shape: f32[1,8,128], index: 13, kind: output, shape index: {2}]
  %14 = xla_tuple %s11, %s12, %s13
  %s15 = sld [smem:[#allocation0]]
  $region70: #{masked_wrapper_forward.1} parent=0
    _
  %s17 = ssub.s32 1, %s15
  %s18 = scalar_select 0, %s17, %s15
  // Predicated region
  $region2: #{masked_wrapper_forward.1} parent=0 // pred_check
    _
  $region3: #{masked_wrapper_forward.1} parent=0 // pred_check_branch
    %20 = sbr.rel (0) target = $region5
  $region4: #{masked_wrapper_forward.1} parent=0 // pred_region
    _
  $region5: #{masked_wrapper_forward.1} parent=0 // pred_fallthru
    _
  // Predicated region
  $region6: #{masked_wrapper_forward.1} parent=0 // pred_check
    _
  $region7: #{masked_wrapper_forward.1} parent=0 // pred_check_branch
    %22 = sbr.rel (0) target = $region9
  $region8: #{masked_wrapper_forward.1} parent=0 // pred_region
    _
  $region9: #{masked_wrapper_forward.1} parent=0 // pred_fallthru
    _
  // Predicated region
  $region10: #{masked_wrapper_forward.1} parent=0 // pred_check
    _
  $region11: #{masked_wrapper_forward.1} parent=0 // pred_check_branch
    %24 = sbr.rel (0) target = $region13
  $region12: #{masked_wrapper_forward.1} parent=0 // pred_region
    _
  $region13: #{masked_wrapper_forward.1} parent=0 // pred_fallthru
    _
  // Predicated region
  $region14: #{masked_wrapper_forward.1} parent=0 // pred_check
    _
  $region15: #{masked_wrapper_forward.1} parent=0 // pred_check_branch
    %26 = sbr.rel (0) target = $region17
  $region16: #{masked_wrapper_forward.1} parent=0 // pred_region
    _
  $region17: #{masked_wrapper_forward.1} parent=0 // pred_fallthru
    _
  // Predicated region
  $region18: #{masked_wrapper_forward.1} parent=0 // pred_check
    _
  $region19: #{masked_wrapper_forward.1} parent=0 // pred_check_branch
    %28 = sbr.rel (0) target = $region21
  $region20: #{masked_wrapper_forward.1} parent=0 // pred_region
    _
  $region21: #{masked_wrapper_forward.1} parent=0 // pred_fallthru
    _
  // Predicated region
  $region22: #{masked_wrapper_forward.1} parent=0 // pred_check
    _
  $region23: #{masked_wrapper_forward.1} parent=0 // pred_check_branch
    %30 = sbr.rel (0) target = $region25
  $region24: #{masked_wrapper_forward.1} parent=0 // pred_region
    _
  $region25: #{masked_wrapper_forward.1} parent=0 // pred_fallthru
    _
  // Predicated region
  $region26: #{masked_wrapper_forward.1} parent=0 // pred_check
    _
  $region27: #{masked_wrapper_forward.1} parent=0 // pred_check_branch
    %32 = sbr.rel (0) target = $region29
  $region28: #{masked_wrapper_forward.1} parent=0 // pred_region
    _
  $region29: #{masked_wrapper_forward.1} parent=0 // pred_fallthru
    _
  // Predicated region
  $region30: #{masked_wrapper_forward.1} parent=0 // pred_check
    _
  $region31: #{masked_wrapper_forward.1} parent=0 // pred_check_branch
    %34 = sbr.rel (0) target = $region33
  $region32: #{masked_wrapper_forward.1} parent=0 // pred_region
    _
  $region33: #{masked_wrapper_forward.1} parent=0 // pred_fallthru
    _
  // Predicated region
  $region34: #{masked_wrapper_forward.1} parent=0 // pred_check
    _
  $region35: #{masked_wrapper_forward.1} parent=0 // pred_check_branch
    %36 = sbr.rel (0) target = $region37
  $region36: #{masked_wrapper_forward.1} parent=0 // pred_region
    _
  $region37: #{masked_wrapper_forward.1} parent=0 // pred_fallthru
    _
  // Predicated region
  $region38: #{masked_wrapper_forward.1} parent=0 // pred_check
    _
  $region39: #{masked_wrapper_forward.1} parent=0 // pred_check_branch
    %38 = sbr.rel (0) target = $region41
  $region40: #{masked_wrapper_forward.1} parent=0 // pred_region
    _
  $region41: #{masked_wrapper_forward.1} parent=0 // pred_fallthru
    _
  // Predicated region
  $region42: #{masked_wrapper_forward.1} parent=0 // pred_check
    _
  $region43: #{masked_wrapper_forward.1} parent=0 // pred_check_branch
    %40 = sbr.rel (0) target = $region45
  $region44: #{masked_wrapper_forward.1} parent=0 // pred_region
    _
  $region45: #{masked_wrapper_forward.1} parent=0 // pred_fallthru
    _
  %v41 = vld [vmem:[%s0] sm:$0xff]
  %v42 = vld [vmem:[%s4] sm:$0xff]
  %v43 = vld [vmem:[%s4 + $0x8] sm:$0xff]
  %v44 = vld [vmem:[%s4 + $0x10] sm:$0xff]
  %v45 = vld [vmem:[%s4 + $0x18] sm:$0xff]
  %v46 = vld [vmem:[%s5] sm:$0xff]
  %v47 = vld [vmem:[%s5 + $0x8] sm:$0xff]
  %v48 = vld [vmem:[%s5 + $0x10] sm:$0xff]
  %v49 = vld [vmem:[%s5 + $0x18] sm:$0xff]
  %51 = vset.pattern.permute.xlu0 0
  %52 = vperm.xlu0 %51, %v46
  %v53 = vpop.permute.xlu0 %52
  %56 = vset.pattern.permute.xlu0 0
  %57 = vperm.xlu0 %56, %v47
  %v58 = vpop.permute.xlu0 %57
  %61 = vset.pattern.permute.xlu0 0
  %62 = vperm.xlu0 %61, %v48
  %v63 = vpop.permute.xlu0 %62
  %66 = vset.pattern.permute.xlu0 0
  %67 = vperm.xlu0 %66, %v49
  %v68 = vpop.permute.xlu0 %67
  %vm70 = vcmask 64512
  %v72 = vsel %vm70, %v42, 0
  %v75 = vsel %vm70, %v43, 0
  %v78 = vsel %vm70, %v44, 0
  %v81 = vsel %vm70, %v45, 0
  %83 = vmatprep.subr.mxu0 0.0
  %84 = vmatpush1.msra.mxu0 %v41
  %85 = vmatprep.subr.mxu0 0.0
  %86 = vmatpush1.msra.mxu0 0.0
  %87 = vmatprep.subr.mxu0 0.0
  %88 = vmatpush1.msra.mxu0 0.0
  %89 = vmatprep.subr.mxu0 0.0
  %90 = vmatpush1.msra.mxu0 0.0
  %91 = vmatprep.subr.mxu0 0.0
  %92 = vmatpush1.msra.mxu0 0.0
  %93 = vmatprep.subr.mxu0 0.0
  %94 = vmatpush1.msra.mxu0 0.0
  %95 = vmatprep.subr.mxu0 0.0
  %96 = vmatpush1.msra.mxu0 0.0
  %97 = vmatprep.subr.mxu0 0.0
  %98 = vmatpush1.msra.mxu0 0.0
  %99 = vmatprep.subr.mxu0 0.0
  %100 = vmatpush1.msra.mxu0 0.0
  %101 = vmatprep.subr.mxu0 0.0
  %102 = vmatpush1.msra.mxu0 0.0
  %103 = vmatprep.subr.mxu0 0.0
  %104 = vmatpush1.msra.mxu0 0.0
  %105 = vmatprep.subr.mxu0 0.0
  %106 = vmatpush1.msra.mxu0 0.0
  %107 = vmatprep.subr.mxu0 0.0
  %108 = vmatpush1.msra.mxu0 0.0
  %109 = vmatprep.subr.mxu0 0.0
  %110 = vmatpush1.msra.mxu0 0.0
  %111 = vmatprep.subr.mxu0 0.0
  %112 = vmatpush1.msra.mxu0 0.0
  %113 = vmatprep.subr.mxu0 0.0
  %114 = vmatpush1.msra.mxu0 0.0
  %115 = vmatprep.subr.mxu0 0.0
  %116 = vmatpush1.msra.mxu0 0.0
  %117 = vmatprep.subr.mxu0 0.0
  %118 = vmatpush1.msra.mxu0 0.0
  %119 = vmatprep.subr.mxu0 0.0
  %120 = vmatpush1.msra.mxu0 0.0
  %121 = vmatprep.subr.mxu0 0.0
  %122 = vmatpush1.msra.mxu0 0.0
  %123 = vmatprep.subr.mxu0 0.0
  %124 = vmatpush1.msra.mxu0 0.0
  %125 = vmatprep.subr.mxu0 0.0
  %126 = vmatpush1.msra.mxu0 0.0
  %127 = vmatprep.subr.mxu0 0.0
  %128 = vmatpush1.msra.mxu0 0.0
  %129 = vmatprep.subr.mxu0 0.0
  %130 = vmatpush1.msra.mxu0 0.0
  %131 = vmatprep.subr.mxu0 0.0
  %132 = vmatpush1.msra.mxu0 0.0
  %133 = vmatprep.subr.mxu0 0.0
  %134 = vmatpush1.msra.mxu0 0.0
  %135 = vmatprep.subr.mxu0 0.0
  %136 = vmatpush1.msra.mxu0 0.0
  %137 = vmatprep.subr.mxu0 0.0
  %138 = vmatpush1.msra.mxu0 0.0
  %139 = vmatprep.subr.mxu0 0.0
  %140 = vmatpush1.msra.mxu0 0.0
  %141 = vmatprep.subr.mxu0 0.0
  %142 = vmatpush1.msra.mxu0 0.0
  %143 = vmatprep.subr.mxu0 0.0
  %144 = vmatpush1.msra.mxu0 0.0
  %145 = vmatprep.subr.mxu0 0.0
  %146 = vmatpush1.msra.mxu0 0.0
  %147 = vmatprep.mubr.f32.mxu0 0.0
  %148 = vmatmul.mubr.f32.gmra.mrb[0].mxu0 %v72
  %v149 = vpop.f32.mrb[0].mxu0
  %v150 = vadd.f32 %v53, %v149
  %v151 = vpop.f32.mrb[0].mxu0
  %152 = vmatprep.mubr.f32.mxu0 0.0
  %153 = vmatmul.mubr.f32.gmra.mrb[0].mxu0 %v75
  %v154 = vpop.f32.mrb[0].mxu0
  %v155 = vadd.f32 %v58, %v154
  %v156 = vpop.f32.mrb[0].mxu0
  %157 = vmatprep.mubr.f32.mxu0 0.0
  %158 = vmatmul.mubr.f32.gmra.mrb[0].mxu0 %v78
  %v159 = vpop.f32.mrb[0].mxu0
  %v160 = vadd.f32 %v63, %v159
  %v161 = vpop.f32.mrb[0].mxu0
  %162 = vmatprep.mubr.f32.mxu0 0.0
  %163 = vmatmul.mubr.f32.gmra.mrb[0].mxu0 %v81
  %v164 = vpop.f32.mrb[0].mxu0
  %v165 = vadd.f32 %v68, %v164
  %v166 = vpop.f32.mrb[0].mxu0
  %167 = vdwg.mxu0
  %v168 = vtanh.pop %v150
  %v169 = vtanh.pop %v155
  %v170 = vtanh.pop %v160
  %v171 = vtanh.pop %v165
  %v172 = vld [vmem:[%s6] sm:$0xff]
  %v173 = vld [vmem:[%s6 + $0x8] sm:$0xff]
  %v174 = vld [vmem:[%s6 + $0x10] sm:$0xff]
  %v175 = vld [vmem:[%s6 + $0x18] sm:$0xff]
  %v176 = vld [vmem:[%s7] sm:$0xff]
  %v177 = vld [vmem:[%s7 + $0x8] sm:$0xff]
  %v178 = vld [vmem:[%s7 + $0x10] sm:$0xff]
  %v179 = vld [vmem:[%s7 + $0x18] sm:$0xff]
  %181 = vset.pattern.permute.xlu0 0
  %182 = vperm.xlu0 %181, %v176
  %v183 = vpop.permute.xlu0 %182
  %186 = vset.pattern.permute.xlu0 0
  %187 = vperm.xlu0 %186, %v177
  %v188 = vpop.permute.xlu0 %187
  %191 = vset.pattern.permute.xlu0 0
  %192 = vperm.xlu0 %191, %v178
  %v193 = vpop.permute.xlu0 %192
  %196 = vset.pattern.permute.xlu0 0
  %197 = vperm.xlu0 %196, %v179
  %v198 = vpop.permute.xlu0 %197
  %vm200 = vcmask 261120
  %v202 = vsel %vm200, %v172, 0
  %v205 = vsel %vm200, %v173, 0
  %v208 = vsel %vm200, %v174, 0
  %v211 = vsel %vm200, %v175, 0
  %213 = vmatprep.subr.mxu0 0.0
  %214 = vmatpush1.msra.mxu0 %v168
  %215 = vmatprep.subr.mxu0 0.0
  %216 = vmatpush1.msra.mxu0 %v169
  %217 = vmatprep.subr.mxu0 0.0
  %218 = vmatpush1.msra.mxu0 %v170
  %219 = vmatprep.subr.mxu0 0.0
  %220 = vmatpush1.msra.mxu0 %v171
  %221 = vmatprep.subr.mxu0 0.0
  %222 = vmatpush1.msra.mxu0 0.0
  %223 = vmatprep.subr.mxu0 0.0
  %224 = vmatpush1.msra.mxu0 0.0
  %225 = vmatprep.subr.mxu0 0.0
  %226 = vmatpush1.msra.mxu0 0.0
  %227 = vmatprep.subr.mxu0 0.0
  %228 = vmatpush1.msra.mxu0 0.0
  %229 = vmatprep.subr.mxu0 0.0
  %230 = vmatpush1.msra.mxu0 0.0
  %231 = vmatprep.subr.mxu0 0.0
  %232 = vmatpush1.msra.mxu0 0.0
  %233 = vmatprep.subr.mxu0 0.0
  %234 = vmatpush1.msra.mxu0 0.0
  %235 = vmatprep.subr.mxu0 0.0
  %236 = vmatpush1.msra.mxu0 0.0
  %237 = vmatprep.subr.mxu0 0.0
  %238 = vmatpush1.msra.mxu0 0.0
  %239 = vmatprep.subr.mxu0 0.0
  %240 = vmatpush1.msra.mxu0 0.0
  %241 = vmatprep.subr.mxu0 0.0
  %242 = vmatpush1.msra.mxu0 0.0
  %243 = vmatprep.subr.mxu0 0.0
  %244 = vmatpush1.msra.mxu0 0.0
  %245 = vmatprep.subr.mxu0 0.0
  %246 = vmatpush1.msra.mxu0 0.0
  %247 = vmatprep.subr.mxu0 0.0
  %248 = vmatpush1.msra.mxu0 0.0
  %249 = vmatprep.subr.mxu0 0.0
  %250 = vmatpush1.msra.mxu0 0.0
  %251 = vmatprep.subr.mxu0 0.0
  %252 = vmatpush1.msra.mxu0 0.0
  %253 = vmatprep.subr.mxu0 0.0
  %254 = vmatpush1.msra.mxu0 0.0
  %255 = vmatprep.subr.mxu0 0.0
  %256 = vmatpush1.msra.mxu0 0.0
  %257 = vmatprep.subr.mxu0 0.0
  %258 = vmatpush1.msra.mxu0 0.0
  %259 = vmatprep.subr.mxu0 0.0
  %260 = vmatpush1.msra.mxu0 0.0
  %261 = vmatprep.subr.mxu0 0.0
  %262 = vmatpush1.msra.mxu0 0.0
  %263 = vmatprep.subr.mxu0 0.0
  %264 = vmatpush1.msra.mxu0 0.0
  %265 = vmatprep.subr.mxu0 0.0
  %266 = vmatpush1.msra.mxu0 0.0
  %267 = vmatprep.subr.mxu0 0.0
  %268 = vmatpush1.msra.mxu0 0.0
  %269 = vmatprep.subr.mxu0 0.0
  %270 = vmatpush1.msra.mxu0 0.0
  %271 = vmatprep.subr.mxu0 0.0
  %272 = vmatpush1.msra.mxu0 0.0
  %273 = vmatprep.subr.mxu0 0.0
  %274 = vmatpush1.msra.mxu0 0.0
  %275 = vmatprep.subr.mxu0 0.0
  %276 = vmatpush1.msra.mxu0 0.0
  %277 = vmatprep.mubr.f32.mxu0 0.0
  %278 = vmatmul.mubr.f32.gmra.mrb[0].mxu0 %v202
  %v279 = vpop.f32.mrb[0].mxu0
  %v280 = vadd.f32 %v183, %v279
  %v281 = vpop.f32.mrb[0].mxu0
  %282 = vmatprep.mubr.f32.mxu0 0.0
  %283 = vmatmul.mubr.f32.gmra.mrb[0].mxu0 %v205
  %v284 = vpop.f32.mrb[0].mxu0
  %v285 = vadd.f32 %v188, %v284
  %v286 = vpop.f32.mrb[0].mxu0
  %287 = vmatprep.mubr.f32.mxu0 0.0
  %288 = vmatmul.mubr.f32.gmra.mrb[0].mxu0 %v208
  %v289 = vpop.f32.mrb[0].mxu0
  %v290 = vadd.f32 %v193, %v289
  %v291 = vpop.f32.mrb[0].mxu0
  %292 = vmatprep.mubr.f32.mxu0 0.0
  %293 = vmatmul.mubr.f32.gmra.mrb[0].mxu0 %v211
  %v294 = vpop.f32.mrb[0].mxu0
  %v295 = vadd.f32 %v198, %v294
  %v296 = vpop.f32.mrb[0].mxu0
  %297 = vdwg.mxu0
  %v298 = vld [vmem:[%s3] sm:$0xff]
  %v299 = vld [vmem:[%s3 + $0x8] sm:$0xff]
  %v300 = vld [vmem:[%s3 + $0x10] sm:$0xff]
  %v301 = vld [vmem:[%s3 + $0x18] sm:$0xff]
  %v303 = vsel %vm200, %v280, 0
  %v306 = vsel %vm200, %v285, 0
  %v309 = vsel %vm200, %v290, 0
  %v312 = vsel %vm200, %v295, 0
  %314 = vmatprep.subr.mxu0 0.0
  %315 = vmatpush1.msra.mxu0 %v298
  %316 = vmatprep.subr.mxu0 0.0
  %317 = vmatpush1.msra.mxu0 %v299
  %318 = vmatprep.subr.mxu0 0.0
  %319 = vmatpush1.msra.mxu0 %v300
  %320 = vmatprep.subr.mxu0 0.0
  %321 = vmatpush1.msra.mxu0 %v301
  %322 = vmatprep.subr.mxu0 0.0
  %323 = vmatpush1.msra.mxu0 0.0
  %324 = vmatprep.subr.mxu0 0.0
  %325 = vmatpush1.msra.mxu0 0.0
  %326 = vmatprep.subr.mxu0 0.0
  %327 = vmatpush1.msra.mxu0 0.0
  %328 = vmatprep.subr.mxu0 0.0
  %329 = vmatpush1.msra.mxu0 0.0
  %330 = vmatprep.subr.mxu0 0.0
  %331 = vmatpush1.msra.mxu0 0.0
  %332 = vmatprep.subr.mxu0 0.0
  %333 = vmatpush1.msra.mxu0 0.0
  %334 = vmatprep.subr.mxu0 0.0
  %335 = vmatpush1.msra.mxu0 0.0
  %336 = vmatprep.subr.mxu0 0.0
  %337 = vmatpush1.msra.mxu0 0.0
  %338 = vmatprep.subr.mxu0 0.0
  %339 = vmatpush1.msra.mxu0 0.0
  %340 = vmatprep.subr.mxu0 0.0
  %341 = vmatpush1.msra.mxu0 0.0
  %342 = vmatprep.subr.mxu0 0.0
  %343 = vmatpush1.msra.mxu0 0.0
  %344 = vmatprep.subr.mxu0 0.0
  %345 = vmatpush1.msra.mxu0 0.0
  %346 = vmatprep.subr.mxu0 0.0
  %347 = vmatpush1.msra.mxu0 0.0
  %348 = vmatprep.subr.mxu0 0.0
  %349 = vmatpush1.msra.mxu0 0.0
  %350 = vmatprep.subr.mxu0 0.0
  %351 = vmatpush1.msra.mxu0 0.0
  %352 = vmatprep.subr.mxu0 0.0
  %353 = vmatpush1.msra.mxu0 0.0
  %354 = vmatprep.subr.mxu0 0.0
  %355 = vmatpush1.msra.mxu0 0.0
  %356 = vmatprep.subr.mxu0 0.0
  %357 = vmatpush1.msra.mxu0 0.0
  %358 = vmatprep.subr.mxu0 0.0
  %359 = vmatpush1.msra.mxu0 0.0
  %360 = vmatprep.subr.mxu0 0.0
  %361 = vmatpush1.msra.mxu0 0.0
  %362 = vmatprep.subr.mxu0 0.0
  %363 = vmatpush1.msra.mxu0 0.0
  %364 = vmatprep.subr.mxu0 0.0
  %365 = vmatpush1.msra.mxu0 0.0
  %366 = vmatprep.subr.mxu0 0.0
  %367 = vmatpush1.msra.mxu0 0.0
  %368 = vmatprep.subr.mxu0 0.0
  %369 = vmatpush1.msra.mxu0 0.0
  %370 = vmatprep.subr.mxu0 0.0
  %371 = vmatpush1.msra.mxu0 0.0
  %372 = vmatprep.subr.mxu0 0.0
  %373 = vmatpush1.msra.mxu0 0.0
  %374 = vmatprep.subr.mxu0 0.0
  %375 = vmatpush1.msra.mxu0 0.0
  %376 = vmatprep.subr.mxu0 0.0
  %377 = vmatpush1.msra.mxu0 0.0
  %378 = vmatprep.mubr.f32.mxu0 0.0
  %379 = vmatmul.mubr.f32.gmra.mrb[0].mxu0 %v303
  %v380 = vpop.f32.mrb[0].mxu0
  %v381 = vadd.f32 0.0, %v380
  %v382 = vpop.f32.mrb[0].mxu0
  %383 = vmatprep.mubr.f32.mxu0 0.0
  %384 = vmatmul.mubr.f32.gmra.mrb[0].mxu0 %v306
  %v385 = vpop.f32.mrb[0].mxu0
  %v386 = vadd.f32 0.0, %v385
  %v387 = vpop.f32.mrb[0].mxu0
  %388 = vmatprep.mubr.f32.mxu0 0.0
  %389 = vmatmul.mubr.f32.gmra.mrb[0].mxu0 %v309
  %v390 = vpop.f32.mrb[0].mxu0
  %v391 = vadd.f32 0.0, %v390
  %v392 = vpop.f32.mrb[0].mxu0
  %393 = vmatprep.mubr.f32.mxu0 0.0
  %394 = vmatmul.mubr.f32.gmra.mrb[0].mxu0 %v312
  %v395 = vpop.f32.mrb[0].mxu0
  %v396 = vadd.f32 0.0, %v395
  %v397 = vpop.f32.mrb[0].mxu0
  %398 = vdwg.mxu0
  %v399 = vld [vmem:[%s8] sm:$0xff]
  %v400 = vld [vmem:[%s8 + $0x8] sm:$0xff]
  %v401 = vld [vmem:[%s8 + $0x10] sm:$0xff]
  %v402 = vld [vmem:[%s8 + $0x18] sm:$0xff]
  %404 = vset.pattern.permute.xlu0 0
  %405 = vperm.xlu0 %404, %v399
  %v406 = vpop.permute.xlu0 %405
  %409 = vset.pattern.permute.xlu0 0
  %410 = vperm.xlu0 %409, %v400
  %v411 = vpop.permute.xlu0 %410
  %414 = vset.pattern.permute.xlu0 0
  %415 = vperm.xlu0 %414, %v401
  %v416 = vpop.permute.xlu0 %415
  %419 = vset.pattern.permute.xlu0 0
  %420 = vperm.xlu0 %419, %v402
  %v421 = vpop.permute.xlu0 %420
  %v423 = vadd.f32 %v406, %v381
  %v424 = vadd.f32 %v411, %v386
  %v425 = vadd.f32 %v416, %v391
  %v426 = vadd.f32 %v421, %v396
  %vm427 = vcmask 15360
  %428 = vst.msk [vmem:[%s11] sm:$0xff] %vm427, %v423
  %429 = vst.msk [vmem:[%s11 + $0x8] sm:$0xff] %vm427, %v424
  %430 = vst.msk [vmem:[%s11 + $0x10] sm:$0xff] %vm427, %v425
  %431 = vst.msk [vmem:[%s11 + $0x18] sm:$0xff] %vm427, %v426
  %v432 = vld [vmem:[%s9] sm:$0xff]
  %v433 = vld [vmem:[%s10] sm:$0xff]
  %435 = vset.pattern.permute.xlu0 0
  %436 = vperm.xlu0 %435, %v433
  %v437 = vpop.permute.xlu0 %436
  %v440 = vsel %vm200, %v432, 0
  %442 = vmatprep.subr.mxu0 0.0
  %443 = vmatpush1.msra.mxu0 %v280
  %444 = vmatprep.subr.mxu0 0.0
  %445 = vmatpush1.msra.mxu0 %v285
  %446 = vmatprep.subr.mxu0 0.0
  %447 = vmatpush1.msra.mxu0 %v290
  %448 = vmatprep.subr.mxu0 0.0
  %449 = vmatpush1.msra.mxu0 %v295
  %450 = vmatprep.subr.mxu0 0.0
  %451 = vmatpush1.msra.mxu0 0.0
  %452 = vmatprep.subr.mxu0 0.0
  %453 = vmatpush1.msra.mxu0 0.0
  %454 = vmatprep.subr.mxu0 0.0
  %455 = vmatpush1.msra.mxu0 0.0
  %456 = vmatprep.subr.mxu0 0.0
  %457 = vmatpush1.msra.mxu0 0.0
  %458 = vmatprep.subr.mxu0 0.0
  %459 = vmatpush1.msra.mxu0 0.0
  %460 = vmatprep.subr.mxu0 0.0
  %461 = vmatpush1.msra.mxu0 0.0
  %462 = vmatprep.subr.mxu0 0.0
  %463 = vmatpush1.msra.mxu0 0.0
  %464 = vmatprep.subr.mxu0 0.0
  %465 = vmatpush1.msra.mxu0 0.0
  %466 = vmatprep.subr.mxu0 0.0
  %467 = vmatpush1.msra.mxu0 0.0
  %468 = vmatprep.subr.mxu0 0.0
  %469 = vmatpush1.msra.mxu0 0.0
  %470 = vmatprep.subr.mxu0 0.0
  %471 = vmatpush1.msra.mxu0 0.0
  %472 = vmatprep.subr.mxu0 0.0
  %473 = vmatpush1.msra.mxu0 0.0
  %474 = vmatprep.subr.mxu0 0.0
  %475 = vmatpush1.msra.mxu0 0.0
  %476 = vmatprep.subr.mxu0 0.0
  %477 = vmatpush1.msra.mxu0 0.0
  %478 = vmatprep.subr.mxu0 0.0
  %479 = vmatpush1.msra.mxu0 0.0
  %480 = vmatprep.subr.mxu0 0.0
  %481 = vmatpush1.msra.mxu0 0.0
  %482 = vmatprep.subr.mxu0 0.0
  %483 = vmatpush1.msra.mxu0 0.0
  %484 = vmatprep.subr.mxu0 0.0
  %485 = vmatpush1.msra.mxu0 0.0
  %486 = vmatprep.subr.mxu0 0.0
  %487 = vmatpush1.msra.mxu0 0.0
  %488 = vmatprep.subr.mxu0 0.0
  %489 = vmatpush1.msra.mxu0 0.0
  %490 = vmatprep.subr.mxu0 0.0
  %491 = vmatpush1.msra.mxu0 0.0
  %492 = vmatprep.subr.mxu0 0.0
  %493 = vmatpush1.msra.mxu0 0.0
  %494 = vmatprep.subr.mxu0 0.0
  %495 = vmatpush1.msra.mxu0 0.0
  %496 = vmatprep.subr.mxu0 0.0
  %497 = vmatpush1.msra.mxu0 0.0
  %498 = vmatprep.subr.mxu0 0.0
  %499 = vmatpush1.msra.mxu0 0.0
  %500 = vmatprep.subr.mxu0 0.0
  %501 = vmatpush1.msra.mxu0 0.0
  %502 = vmatprep.subr.mxu0 0.0
  %503 = vmatpush1.msra.mxu0 0.0
  %504 = vmatprep.subr.mxu0 0.0
  %505 = vmatpush1.msra.mxu0 0.0
  %506 = vmatprep.mubr.f32.mxu0 0.0
  %507 = vmatmul.mubr.f32.gmra.mrb[0].mxu0 %v440
  %v508 = vpop.f32.mrb[0].mxu0
  %v509 = vadd.f32 %v437, %v508
  %v510 = vpop.f32.mrb[0].mxu0
  %511 = vdwg.mxu0
  %v512 = vld [vmem:[%s2] sm:$0x3]
  %v513 = vunpack.c.0.s8 %v512
  %v514 = vcvt.s32.f32 %v513
  %v515 = vld [vmem:[%s1] sm:$0xff]
  %v516 = vsub.f32 %v509, %v515
  %v517 = vmul.f32 %v516, %v514
  %v518 = vmul.f32 %v517, %v517
  %v519 = vsel %vm200, %v518, 0.0
  %520 = vadd.xlane.f32.xlu0 %v519
  %v521 = vpop.xlane.xlu0 %520
  %v522 = vrot.slane %v521, 4
  %v523 = vadd.f32 %v521, %v522
  %v524 = vrot.slane %v523, 2
  %v525 = vadd.f32 %v523, %v524
  %v526 = vrot.slane %v525, 1
  %v527 = vadd.f32 %v525, %v526
  %s528 = vtos %v527
  %v529 = vstv %s528
  %530 = vst [vmem:[%s12] sm:$0xff] %v529
  %v531 = vsel %vm200, %v514, 0.0
  %532 = vadd.xlane.f32.xlu0 %v531
  %v533 = vpop.xlane.xlu0 %532
  %v534 = vrot.slane %v533, 4
  %v535 = vadd.f32 %v533, %v534
  %v536 = vrot.slane %v535, 2
  %v537 = vadd.f32 %v535, %v536
  %v538 = vrot.slane %v537, 1
  %v539 = vadd.f32 %v537, %v538
  %s540 = vtos %v539
  %v541 = vstv %s540
  %542 = vst [vmem:[%s13] sm:$0xff] %v541
  // Predicated region
  $region46: #{masked_wrapper_forward.1} parent=0 // pred_check
    _
  $region47: #{masked_wrapper_forward.1} parent=0 // pred_check_branch
    %544 = sbr.rel (0) target = $region49
  $region48: #{masked_wrapper_forward.1} parent=0 // pred_region
    _
  $region49: #{masked_wrapper_forward.1} parent=0 // pred_fallthru
    _
  // Predicated region
  $region50: #{masked_wrapper_forward.1} parent=0 // pred_check
    _
  $region51: #{masked_wrapper_forward.1} parent=0 // pred_check_branch
    %546 = sbr.rel (0) target = $region53
  $region52: #{masked_wrapper_forward.1} parent=0 // pred_region
    _
  $region53: #{masked_wrapper_forward.1} parent=0 // pred_fallthru
    _
  // Predicated region
  $region54: #{masked_wrapper_forward.1} parent=0 // pred_check
    _
  $region55: #{masked_wrapper_forward.1} parent=0 // pred_check_branch
    %548 = sbr.rel (0) target = $region57
  $region56: #{masked_wrapper_forward.1} parent=0 // pred_region
    _
  $region57: #{masked_wrapper_forward.1} parent=0 // pred_fallthru
    _
  // Predicated region
  $region58: #{masked_wrapper_forward.1} parent=0 // pred_check
    _
  $region59: #{masked_wrapper_forward.1} parent=0 // pred_check_branch
    %550 = sbr.rel (0) target = $region61
  $region60: #{masked_wrapper_forward.1} parent=0 // pred_region
    _
  $region61: #{masked_wrapper_forward.1} parent=0 // pred_fallthru
    _
  // Predicated region
  $region62: #{masked_wrapper_forward.1} parent=0 // pred_check
    _
  $region63: #{masked_wrapper_forward.1} parent=0 // pred_check_branch
    %552 = sbr.rel (0) target = $region65
  $region64: #{masked_wrapper_forward.1} parent=0 // pred_region
    _
  $region65: #{masked_wrapper_forward.1} parent=0 // pred_fallthru
    _
  // Predicated region
  $region66: #{masked_wrapper_forward.1} parent=0 // pred_check
    _
  $region67: #{masked_wrapper_forward.1} parent=0 // pred_check_branch
    %554 = sbr.rel (0) target = $region69
  $region68: #{masked_wrapper_forward.1} parent=0 // pred_region
    _
  $region69: #{masked_wrapper_forward.1} parent=0 // pred_fallthru
    _

</llo_original>
